<compile_context>
chip_gen: v6e
topology: v6e:2x2x1
jax: 0.10.0
libtpu: 0.0.40
codegen_flags: <defaults>
</compile_context>

<pallas_src>
import math

import jax
import jax.numpy as jnp
from jax.experimental import pallas as pl
from jax.experimental.pallas import tpu as pltpu


def _remap_kernel(x_ref, sel_ref, o_ref):
    # x_ref: (TM, HW) native dtype, sel_ref: (HW, TN) bf16 0/1, o_ref: (TM, TN)
    x = x_ref[...].astype(jnp.bfloat16)
    acc = jnp.dot(x, sel_ref[...], preferred_element_type=jnp.float32)
    o_ref[...] = acc.astype(o_ref.dtype)


def _build_selection_matrix(H, W, cos_t, sin_t, di, dj, flip):
    """(HW, HW) bf16 matrix sel[s, o] = 1 iff output pixel o reads source pixel s."""
    HW = H * W
    # Output pixel coords (integer iotas -> no float divide / modulo).
    yy = jnp.repeat(jnp.arange(H, dtype=jnp.float32), W)  # (HW,)
    xx = jnp.tile(jnp.arange(W, dtype=jnp.float32), H)    # (HW,)

    # forward order: crop -> rotate -> flip  ==> invert in reverse order.
    # 1) inverse horizontal flip
    x1 = jnp.where(flip, (W - 1) - xx, xx)
    y1 = yy

    # 2) inverse rotation about the image center, nearest-neighbour, fill=0.
    cy = (H - 1) * 0.5
    cx = (W - 1) * 0.5
    xs = cos_t * (x1 - cx) + sin_t * (y1 - cy) + cx
    ys = -sin_t * (x1 - cx) + cos_t * (y1 - cy) + cy
    xr = jnp.floor(xs + 0.5)
    yr = jnp.floor(ys + 0.5)
    valid = (xr >= 0) & (xr < W) & (yr >= 0) & (yr < H)

    # 3) inverse padded RandomCrop (constant zero padding outside the image).
    x0 = xr + dj
    y0 = yr + di
    valid = valid & (x0 >= 0) & (x0 < W) & (y0 >= 0) & (y0 < H)

    src = (y0 * W + x0).astype(jnp.int32)
    src = jnp.where(valid, src, -1)                     # -1 never matches -> 0 fill

    s_idx = jnp.arange(HW, dtype=jnp.int32)
    sel = (s_idx[:, None] == src[None, :]).astype(jnp.bfloat16)   # exact 0/1
    return sel


def post_tensor_transform(x, key, *, crop_pad, rot_degrees, dataset="cifar10"):
    """JAX/Pallas equivalent of PostTensorTransform.forward on an NCHW batch."""
    N, C, H, W = x.shape
    NC = N * C
    HW = H * W
    k1, k2, k3, k4, k5 = jax.random.split(key, 5)

    # ProbTransform(RandomCrop((H, W), padding=crop_pad), p=0.8)
    do_crop = jax.random.uniform(k1) < 0.8
    ij = jax.random.randint(k2, (2,), 0, 2 * crop_pad + 1)
    di = jnp.where(do_crop, ij[0] - crop_pad, 0).astype(jnp.float32)
    dj = jnp.where(do_crop, ij[1] - crop_pad, 0).astype(jnp.float32)

    # ProbTransform(RandomRotation(rot_degrees), p=0.5)
    do_rot = jax.random.uniform(k3) < 0.5
    theta_deg = jax.random.uniform(k4, (), minval=-rot_degrees, maxval=rot_degrees)
    theta = jnp.where(do_rot, theta_deg, 0.0) * (math.pi / 180.0)

    # RandomHorizontalFlip(p=0.5)  (only registered when dataset == 'cifar10')
    if dataset == "cifar10":
        flip = jax.random.uniform(k5) < 0.5
    else:
        flip = jnp.bool_(False)

    sel = _build_selection_matrix(H, W, jnp.cos(theta), jnp.sin(theta), di, dj, flip)

    # No wrapper-side dtype casts: reshape only, kernel handles casting.
    x2 = x.reshape(NC, HW)

    # Row tiling (pipelining + bounded VMEM); keep the selection matrix fully
    # resident when small, otherwise tile its output columns too.
    TM = NC if NC <= 256 else 256
    TN = HW if HW <= 1024 else 512
    grid = (pl.cdiv(NC, TM), pl.cdiv(HW, TN))

    itemsize = jnp.dtype(x.dtype).itemsize
    cost = pl.CostEstimate(
        flops=2 * NC * HW * HW,
        transcendentals=0,
        bytes_accessed=2 * NC * HW * itemsize + HW * HW * 2,
    )

    out = pl.pallas_call(
        _remap_kernel,
        out_shape=jax.ShapeDtypeStruct((NC, HW), x.dtype),
        grid=grid,
        in_specs=[
            pl.BlockSpec((TM, HW), lambda i, j: (i, 0)),   # x rows, resident across j
            pl.BlockSpec((HW, TN), lambda i, j: (0, j)),   # selection matrix columns
        ],
        out_specs=pl.BlockSpec((TM, TN), lambda i, j: (i, j)),
        compiler_params=pltpu.CompilerParams(
            dimension_semantics=("parallel", "parallel")),
        cost_estimate=cost,
    )(x2, sel)

    return out.reshape(N, C, H, W)


if __name__ == "__main__":
    key = jax.random.PRNGKey(0)
    kx, kt = jax.random.split(key)
    # opt: input_height = input_width = 16, random_crop (padding) = 5,
    #      random_rotation = 10 degrees, dataset = 'cifar10'
    x = jax.random.uniform(kx, (2, 4, 16, 16), dtype=jnp.float32)
    y = post_tensor_transform(x, kt, crop_pad=5, rot_degrees=10.0,
                              dataset="cifar10")
    jax.block_until_ready(y)
    assert y.shape == x.shape and y.dtype == x.dtype
    print("KERNEL_OK")
</pallas_src>

<mosaic_0001>
module attributes {stable_mosaic.version = 11 : i64} {
  func.func @_remap_kernel(%arg0: i32, %arg1: i32, %arg2: memref<8x256xf32, #tpu.memory_space<vmem>>, %arg3: memref<256x256xbf16, #tpu.memory_space<vmem>>, %arg4: memref<8x256xf32, #tpu.memory_space<vmem>>) attributes {dimension_semantics = [#tpu.dimension_semantics<parallel>, #tpu.dimension_semantics<parallel>], iteration_bounds = array<i64: 1, 1>, scalar_prefetch = 0 : i64, scratch_operands = 0 : i64, tpu.core_type = #tpu.core_type<tc>, window_params = [{transform_indices = @transform_0, window_bounds = array<i64: 8, 256>}, {transform_indices = @transform_1, window_bounds = array<i64: 256, 256>}, {transform_indices = @transform_2, window_bounds = array<i64: 8, 256>}]} {
    %c0 = arith.constant 0 : index
    %c0_0 = arith.constant 0 : index
    %0 = vector.load %arg2[%c0, %c0_0] : memref<8x256xf32, #tpu.memory_space<vmem>>, vector<8x256xf32>
    %1 = arith.truncf %0 : vector<8x256xf32> to vector<8x256xbf16>
    %c0_1 = arith.constant 0 : index
    %c0_2 = arith.constant 0 : index
    %2 = vector.load %arg3[%c0_1, %c0_2] : memref<256x256xbf16, #tpu.memory_space<vmem>>, vector<256x256xbf16>
    %cst = arith.constant dense<0.000000e+00> : vector<8x256xf32>
    %3 = tpu.matmul %1, %2, %cst {dimension_numbers = #tpu.dot_dimension_numbers<[1], [0], [0], [1], [0, 0, 1, 1], [], []>} : vector<8x256xbf16>, vector<256x256xbf16>, vector<8x256xf32> -> vector<8x256xf32>
    %c0_3 = arith.constant 0 : index
    %c0_4 = arith.constant 0 : index
    %4 = vector.load %arg4[%c0_3, %c0_4] : memref<8x256xf32, #tpu.memory_space<vmem>>, vector<8x256xf32>
    tpu.vector_store %arg4[%c0_3, %c0_4], %3 {strides = array<i32>} : memref<8x256xf32, #tpu.memory_space<vmem>>, vector<8x256xf32>,
    return
  }
  func.func @transform_0(%arg0: i32, %arg1: i32) -> (i32, i32) {
    %c0_i32 = arith.constant 0 : i32
    %c0_i32_0 = arith.constant 0 : i32
    return %arg0, %c0_i32 : i32, i32
  }
  func.func @transform_1(%arg0: i32, %arg1: i32) -> (i32, i32) {
    %c0_i32 = arith.constant 0 : i32
    %c0_i32_0 = arith.constant 0 : i32
    return %c0_i32, %arg1 : i32, i32
  }
  func.func @transform_2(%arg0: i32, %arg1: i32) -> (i32, i32) {
    %c0_i32 = arith.constant 0 : i32
    return %arg0, %arg1 : i32, i32
  }
}

</mosaic_0001>

<llo_original>
// kernel: tpu_custom_call.1
$region0: #{tpu_custom_call.1}
  #allocation0 [shape = 'u32[]', space=smem, size = 0x4, offset = 0x4, fixed_abs, tag = 'smem constant byte address 0x4 - core index']
  #allocation1 [shape = 'u32[144,128]{1,0:T(1,128)}', space=vmem, size = 0x12000, scoped, tag = 'internal scratch']
  %s0 = inlined_call_operand.hbm [shape: f32[8,256], index: 0, kind: input, shape index: {}]
  %s1 = inlined_call_operand.hbm [shape: bf16[256,256], index: 1, kind: input, shape index: {}]
  %s2 = inlined_call_operand.hbm [shape: f32[8,256], index: 2, kind: output, shape index: {}]
  %s3 = sld [smem:[#allocation0]]
  $region26: #{tpu_custom_call.1} parent=0
    _
  %s5 = ssub.s32 1, %s3
  %s6 = scalar_select 0, %s5, %s3
  $region1: #{tpu_custom_call.1} parent=0
    #allocation2 [shape = 'u8[8192]{0}', space=vmem, size = 0x2000, scoped, tag = 'input window, operand 0, single buffered']
    #allocation3 [shape = 's32[1]{0}', space=sflag, size = 0x4, scoped, tag = 'scoped memory for tpu_custom_call.1']
    #allocation4 [shape = 's32[1]{0}', space=sflag, size = 0x4, scoped, tag = 'scoped memory for tpu_custom_call.1']
    #allocation5 [shape = 'u8[131072]{0}', space=vmem, size = 0x20000, scoped, tag = 'input window, operand 1, single buffered']
    #allocation6 [shape = 's32[1]{0}', space=sflag, size = 0x4, scoped, tag = 'scoped memory for tpu_custom_call.1']
    #allocation7 [shape = 'u8[8192]{0}', space=vmem, size = 0x2000, scoped, tag = 'output window, operand 0, single buffered']
    %7 = vsyncpa [#allocation3], 0
    %8 = vsyncpa [#allocation6], 0
    %9 = vsyncpa [#allocation4], 0
    // Predicated region
    $region2: #{tpu_custom_call.1} parent=1 // pred_check
      _
    $region3: #{tpu_custom_call.1} parent=1 // pred_check_branch
      %11 = sbr.rel (0) target = $region5
    $region4: #{tpu_custom_call.1} parent=1 // pred_region
      %s13 = ssub.s32 256, 256
      %14 = vsyncadd [#allocation3], %s13
      %s16 = sshll.u32 [#allocation2], 4
      %s17 = int_to_ptr.vmem [resolvable:$true] %s16
      %19 = dma.hbm_to_vmem [thread:$0]  %s0, 256, %s17, [#allocation3]
    $region5: #{tpu_custom_call.1} parent=1 // pred_fallthru
      _
    // Predicated region
    $region6: #{tpu_custom_call.1} parent=1 // pred_check
      _
    $region7: #{tpu_custom_call.1} parent=1 // pred_check_branch
      %21 = sbr.rel (0) target = $region9
    $region8: #{tpu_custom_call.1} parent=1 // pred_region
      %s23 = ssub.s32 4096, 4096
      %24 = vsyncadd [#allocation6], %s23
      %s25 = sshll.u32 [#allocation5], 4
      %s26 = int_to_ptr.vmem [resolvable:$true] %s25
      %31 = dma.hbm_to_vmem [thread:$0]  %s1, 4096, %s26, [#allocation6], 128, 128, 8
    $region9: #{tpu_custom_call.1} parent=1 // pred_fallthru
      _
    // Predicated region
    $region10: #{tpu_custom_call.1} parent=1 // pred_check
      _
    $region11: #{tpu_custom_call.1} parent=1 // pred_check_branch
      %33 = sbr.rel (0) target = $region13
    $region12: #{tpu_custom_call.1} parent=1 // pred_region
      %34 = dma.done [#allocation3], 256
    $region13: #{tpu_custom_call.1} parent=1 // pred_fallthru
      _
    // Predicated region
    $region14: #{tpu_custom_call.1} parent=1 // pred_check
      _
    $region15: #{tpu_custom_call.1} parent=1 // pred_check_branch
      %36 = sbr.rel (0) target = $region17
    $region16: #{tpu_custom_call.1} parent=1 // pred_region
      %37 = dma.done [#allocation6], 4096
    $region17: #{tpu_custom_call.1} parent=1 // pred_fallthru
      _
    %v38 = vld [vmem:[#allocation2] sm:$0xff]
    %v39 = vld [vmem:[#allocation2 + $0x8] sm:$0xff]
    %v40 = vpack.c.bf16 %v38, %v38
    %v41 = vpack.c.bf16 %v39, %v39
    %v42 = vld [vmem:[#allocation5] sm:$0xff]
    %v43 = vld [vmem:[#allocation5 + $0x8] sm:$0xff]
    %v44 = vld [vmem:[#allocation5 + $0x10] sm:$0xff]
    %v45 = vld [vmem:[#allocation5 + $0x18] sm:$0xff]
    %v46 = vld [vmem:[#allocation5 + $0x20] sm:$0xff]
    %v47 = vld [vmem:[#allocation5 + $0x28] sm:$0xff]
    %v48 = vld [vmem:[#allocation5 + $0x30] sm:$0xff]
    %v49 = vld [vmem:[#allocation5 + $0x38] sm:$0xff]
    %v50 = vld [vmem:[#allocation5 + $0x40] sm:$0xff]
    %v51 = vld [vmem:[#allocation5 + $0x48] sm:$0xff]
    %v52 = vld [vmem:[#allocation5 + $0x50] sm:$0xff]
    %v53 = vld [vmem:[#allocation5 + $0x58] sm:$0xff]
    %v54 = vld [vmem:[#allocation5 + $0x60] sm:$0xff]
    %v55 = vld [vmem:[#allocation5 + $0x68] sm:$0xff]
    %v56 = vld [vmem:[#allocation5 + $0x70] sm:$0xff]
    %v57 = vld [vmem:[#allocation5 + $0x78] sm:$0xff]
    %v58 = vld [vmem:[#allocation5 + $0x80] sm:$0xff]
    %v59 = vld [vmem:[#allocation5 + $0x88] sm:$0xff]
    %v60 = vld [vmem:[#allocation5 + $0x90] sm:$0xff]
    %v61 = vld [vmem:[#allocation5 + $0x98] sm:$0xff]
    %v62 = vld [vmem:[#allocation5 + $0xa0] sm:$0xff]
    %v63 = vld [vmem:[#allocation5 + $0xa8] sm:$0xff]
    %v64 = vld [vmem:[#allocation5 + $0xb0] sm:$0xff]
    %v65 = vld [vmem:[#allocation5 + $0xb8] sm:$0xff]
    %v66 = vld [vmem:[#allocation5 + $0xc0] sm:$0xff]
    %v67 = vld [vmem:[#allocation5 + $0xc8] sm:$0xff]
    %v68 = vld [vmem:[#allocation5 + $0xd0] sm:$0xff]
    %v69 = vld [vmem:[#allocation5 + $0xd8] sm:$0xff]
    %v70 = vld [vmem:[#allocation5 + $0xe0] sm:$0xff]
    %v71 = vld [vmem:[#allocation5 + $0xe8] sm:$0xff]
    %v72 = vld [vmem:[#allocation5 + $0xf0] sm:$0xff]
    %v73 = vld [vmem:[#allocation5 + $0xf8] sm:$0xff]
    %v106 = vunpack.c.l.b16 %v42
    %v107 = vunpack.c.h.b16 %v42
    %v108 = vunpack.c.l.b16 %v43
    %v109 = vunpack.c.h.b16 %v43
    %v110 = vunpack.c.l.b16 %v44
    %v111 = vunpack.c.h.b16 %v44
    %v112 = vunpack.c.l.b16 %v45
    %v113 = vunpack.c.h.b16 %v45
    %v114 = vunpack.c.l.b16 %v46
    %v115 = vunpack.c.h.b16 %v46
    %v116 = vunpack.c.l.b16 %v47
    %v117 = vunpack.c.h.b16 %v47
    %v118 = vunpack.c.l.b16 %v48
    %v119 = vunpack.c.h.b16 %v48
    %v120 = vunpack.c.l.b16 %v49
    %v121 = vunpack.c.h.b16 %v49
    %v122 = vunpack.c.l.b16 %v50
    %v123 = vunpack.c.h.b16 %v50
    %v124 = vunpack.c.l.b16 %v51
    %v125 = vunpack.c.h.b16 %v51
    %v126 = vunpack.c.l.b16 %v52
    %v127 = vunpack.c.h.b16 %v52
    %v128 = vunpack.c.l.b16 %v53
    %v129 = vunpack.c.h.b16 %v53
    %v130 = vunpack.c.l.b16 %v54
    %v131 = vunpack.c.h.b16 %v54
    %v132 = vunpack.c.l.b16 %v55
    %v133 = vunpack.c.h.b16 %v55
    %v134 = vunpack.c.l.b16 %v56
    %v135 = vunpack.c.h.b16 %v56
    %v136 = vunpack.c.l.b16 %v57
    %v137 = vunpack.c.h.b16 %v57
    %v138 = vunpack.c.l.b16 %v58
    %v139 = vunpack.c.h.b16 %v58
    %v140 = vunpack.c.l.b16 %v59
    %v141 = vunpack.c.h.b16 %v59
    %v142 = vunpack.c.l.b16 %v60
    %v143 = vunpack.c.h.b16 %v60
    %v144 = vunpack.c.l.b16 %v61
    %v145 = vunpack.c.h.b16 %v61
    %v146 = vunpack.c.l.b16 %v62
    %v147 = vunpack.c.h.b16 %v62
    %v148 = vunpack.c.l.b16 %v63
    %v149 = vunpack.c.h.b16 %v63
    %v150 = vunpack.c.l.b16 %v64
    %v151 = vunpack.c.h.b16 %v64
    %v152 = vunpack.c.l.b16 %v65
    %v153 = vunpack.c.h.b16 %v65
    %v154 = vunpack.c.l.b16 %v66
    %v155 = vunpack.c.h.b16 %v66
    %v156 = vunpack.c.l.b16 %v67
    %v157 = vunpack.c.h.b16 %v67
    %v158 = vunpack.c.l.b16 %v68
    %v159 = vunpack.c.h.b16 %v68
    %v160 = vunpack.c.l.b16 %v69
    %v161 = vunpack.c.h.b16 %v69
    %v162 = vunpack.c.l.b16 %v70
    %v163 = vunpack.c.h.b16 %v70
    %v164 = vunpack.c.l.b16 %v71
    %v165 = vunpack.c.h.b16 %v71
    %v166 = vunpack.c.l.b16 %v72
    %v167 = vunpack.c.h.b16 %v72
    %v168 = vunpack.c.l.b16 %v73
    %v169 = vunpack.c.h.b16 %v73
    %v170 = vpack.c.b16 %v108, %v106
    %v171 = vpack.c.b16 %v109, %v107
    %v172 = vpack.c.b16 %v112, %v110
    %v173 = vpack.c.b16 %v113, %v111
    %v174 = vpack.c.b16 %v116, %v114
    %v175 = vpack.c.b16 %v117, %v115
    %v176 = vpack.c.b16 %v120, %v118
    %v177 = vpack.c.b16 %v121, %v119
    %v178 = vpack.c.b16 %v124, %v122
    %v179 = vpack.c.b16 %v125, %v123
    %v180 = vpack.c.b16 %v128, %v126
    %v181 = vpack.c.b16 %v129, %v127
    %v182 = vpack.c.b16 %v132, %v130
    %v183 = vpack.c.b16 %v133, %v131
    %v184 = vpack.c.b16 %v136, %v134
    %v185 = vpack.c.b16 %v137, %v135
    %v186 = vpack.c.b16 %v140, %v138
    %v187 = vpack.c.b16 %v141, %v139
    %v188 = vpack.c.b16 %v144, %v142
    %v189 = vpack.c.b16 %v145, %v143
    %v190 = vpack.c.b16 %v148, %v146
    %v191 = vpack.c.b16 %v149, %v147
    %v192 = vpack.c.b16 %v152, %v150
    %v193 = vpack.c.b16 %v153, %v151
    %v194 = vpack.c.b16 %v156, %v154
    %v195 = vpack.c.b16 %v157, %v155
    %v196 = vpack.c.b16 %v160, %v158
    %v197 = vpack.c.b16 %v161, %v159
    %v198 = vpack.c.b16 %v164, %v162
    %v199 = vpack.c.b16 %v165, %v163
    %v200 = vpack.c.b16 %v168, %v166
    %v201 = vpack.c.b16 %v169, %v167
    %234 = vmatprep.subr.bf16.mxu0 %v185
    %235 = vmatpush1.bf16.msra.mxu0 %v184
    %236 = vmatprep.subr.bf16.mxu0 %v183
    %237 = vmatpush1.bf16.msra.mxu0 %v182
    %238 = vmatprep.subr.bf16.mxu0 %v181
    %239 = vmatpush1.bf16.msra.mxu0 %v180
    %240 = vmatprep.subr.bf16.mxu0 %v179
    %241 = vmatpush1.bf16.msra.mxu0 %v178
    %242 = vmatprep.subr.bf16.mxu0 %v177
    %243 = vmatpush1.bf16.msra.mxu0 %v176
    %244 = vmatprep.subr.bf16.mxu0 %v175
    %245 = vmatpush1.bf16.msra.mxu0 %v174
    %246 = vmatprep.subr.bf16.mxu0 %v173
    %247 = vmatpush1.bf16.msra.mxu0 %v172
    %248 = vmatprep.subr.bf16.mxu0 %v171
    %249 = vmatpush1.bf16.msra.mxu0 %v170
    %250 = vmatprep.subr.bf16.mxu0 %v201
    %251 = vmatpush2.bf16.msra.mxu0 %v200
    %252 = vmatprep.subr.bf16.mxu0 %v199
    %253 = vmatpush2.bf16.msra.mxu0 %v198
    %254 = vmatprep.subr.bf16.mxu0 %v197
    %255 = vmatpush2.bf16.msra.mxu0 %v196
    %256 = vmatprep.subr.bf16.mxu0 %v195
    %257 = vmatpush2.bf16.msra.mxu0 %v194
    %258 = vmatprep.subr.bf16.mxu0 %v193
    %259 = vmatpush2.bf16.msra.mxu0 %v192
    %260 = vmatprep.subr.bf16.mxu0 %v191
    %261 = vmatpush2.bf16.msra.mxu0 %v190
    %262 = vmatprep.subr.bf16.mxu0 %v189
    %263 = vmatpush2.bf16.msra.mxu0 %v188
    %264 = vmatprep.subr.bf16.mxu0 %v187
    %265 = vmatpush2.bf16.msra.mxu0 %v186
    %266 = vmatprep.mubr.bf16.mxu0 %v41
    %267 = vmatmul.mubr.bf16.gmra.mxu0 %v40
    %v268 = vpop.f32.mrf.mxu0
    %v269 = vadd.f32 0.0, %v268
    %v270 = vpop.f32.mrf.mxu0
    %v271 = vadd.f32 0.0, %v270
    %v272 = vpop.f32.mrf.mxu0
    %v273 = vpop.f32.mrf.mxu0
    %274 = vdwg.mxu0
    %275 = vst [vmem:[#allocation7] sm:$0xff] %v269
    %276 = vst [vmem:[#allocation7 + $0x8] sm:$0xff] %v271
    // Predicated region
    $region18: #{tpu_custom_call.1} parent=1 // pred_check
      _
    $region19: #{tpu_custom_call.1} parent=1 // pred_check_branch
      %278 = sbr.rel (0) target = $region21
    $region20: #{tpu_custom_call.1} parent=1 // pred_region
      %s280 = ssub.s32 256, 256
      %281 = vsyncadd [#allocation4], %s280
      %s283 = sshll.u32 [#allocation7], 4
      %s284 = int_to_ptr.vmem [resolvable:$true] %s283
      %286 = dma.vmem_to_hbm [thread:$0]  %s284, 256, %s2, [#allocation4]
    $region21: #{tpu_custom_call.1} parent=1 // pred_fallthru
      _
    // Predicated region
    $region22: #{tpu_custom_call.1} parent=1 // pred_check
      _
    $region23: #{tpu_custom_call.1} parent=1 // pred_check_branch
      %288 = sbr.rel (0) target = $region25
    $region24: #{tpu_custom_call.1} parent=1 // pred_region
      %289 = dma.done [#allocation4], 256
    $region25: #{tpu_custom_call.1} parent=1 // pred_fallthru
      _
    %290 = vsyncpa [#allocation3], 1
    %291 = vsyncpa [#allocation6], 1
    %292 = vsyncpa [#allocation4], 1

</llo_original>
